<compile_context>
chip_gen: v5e
topology: v5e:2x2
jax: 0.10.0
libtpu: 0.0.40
codegen_flags: <defaults>
</compile_context>

<pallas_src>
import jax
import jax.numpy as jnp
from jax.experimental import pallas as pl
from jax.experimental.pallas import tpu as pltpu

_MiB = 1 << 20


def _round_up(x, m):
    return (x + m - 1) // m * m


def _vmem_capacity_bytes():
    try:
        return int(pltpu.get_tpu_info().vmem_capacity_bytes)
    except Exception:
        return 64 * _MiB  # conservative (v7x-sized) fallback, safe on all generations


def _choose_tiles(B, D, itemsize):
    """Byte-capped, layout-padding-aware, generation-aware tile sizing."""
    vmem_cap = _vmem_capacity_bytes()
    # Use roughly half of physical VMEM for our buffers (clamped to 16..64 MiB).
    budget = max(16 * _MiB, min(64 * _MiB, vmem_cap // 2))

    d_pad = _round_up(D, 128)

    # ---- feature (reduction) axis tiling: safety net for very wide feature vectors ----
    # Footprint of the narrowest (8-row) batch tile with a full-D block:
    #   x (2 bufs) + weight (8-sublane padded, 2 bufs) + out (lane-padded, 2 bufs) + f32 acc.
    min_full_d = (2 * 8 * d_pad + 2 * 8 * d_pad) * itemsize + 8 * 128 * (2 * itemsize + 4)
    if min_full_d > budget:
        # Cap the resident (double-buffered, 8-sublane padded) weight slice at ~budget/4.
        tile_d = (budget // 4) // (2 * 8 * itemsize)
        tile_d = max(128, (tile_d // 128) * 128)
    else:
        tile_d = D
    if tile_d >= D:
        tile_d = D
    tile_dp = _round_up(tile_d, 128)

    # ---- batch tile: byte-capped using the *padded* per-row VMEM footprint ----
    w_bytes = 2 * 8 * tile_dp * itemsize                  # weight, double-buffered
    per_row = (2 * tile_dp * itemsize                     # x, double-buffered
               + 2 * 128 * itemsize                       # out tile (lane-padded), double-buffered
               + 128 * 4)                                 # f32 accumulator scratch (lane-padded)
    tile_b = max(8, ((budget - w_bytes) // per_row // 8) * 8)

    # Guarantee >= 2 (ideally 4) batch tiles so v7x's two TensorCores both stream and
    # there is always DMA/compute overlap (neutral on v5e/v6e).
    if B >= 32:
        tile_b = min(tile_b, _round_up(pl.cdiv(B, 4), 8))
    elif B >= 16:
        tile_b = min(tile_b, _round_up(pl.cdiv(B, 2), 8))
    if tile_b >= B:
        tile_b = B

    return tile_b, tile_d


def _vmem_limit_bytes(tile_b, tile_d, itemsize):
    vmem_cap = _vmem_capacity_bytes()
    tile_dp = _round_up(tile_d, 128)
    tb_pad = _round_up(max(tile_b, 1), 8)
    footprint = (2 * 8 * tile_dp * itemsize
                 + tb_pad * (2 * tile_dp * itemsize + 2 * 128 * itemsize + 128 * 4))
    return int(min(vmem_cap, max(32 * _MiB, footprint + 16 * _MiB)))


def _make_kernel(D, tile_d):
    ragged_d = (tile_d < D) and (D % tile_d != 0)

    def kernel(x_ref, w_ref, b_ref, o_ref, acc_ref):
        # x_ref: (TB, TD) VMEM   w_ref: (1, TD) VMEM   b_ref: (1,) f32 SMEM
        # o_ref: (TB, 1) VMEM    acc_ref: (TB, 1) f32 VMEM scratch
        k = pl.program_id(1)

        @pl.when(k == 0)
        def _init():
            acc_ref[...] = jnp.zeros_like(acc_ref)

        # VPU multiply with (1, TD) row broadcast, then XLU lane reduce.
        prod = x_ref[...].astype(jnp.float32) * w_ref[...].astype(jnp.float32)
        if ragged_d:
            # Mask the padded tail of the last (ragged) feature tile.
            lane = jax.lax.broadcasted_iota(jnp.int32, (1, tile_d), 1)
            prod = jnp.where(k * tile_d + lane < D, prod, 0.0)
        acc_ref[...] += jnp.sum(prod, axis=-1, keepdims=True)

        @pl.when(k == pl.num_programs(1) - 1)
        def _finalize():
            # f32 bias added to the f32 accumulator before the final downcast.
            o_ref[...] = (acc_ref[...] + b_ref[0]).astype(o_ref.dtype)

    return kernel


def logistic_regression_forward(x, weight, bias, *, tile_b=None, tile_d=None):
    """x: (B, D); weight: (1, D) (PyTorch nn.Linear layout); bias: (1,). Returns (B, 1)."""
    B, D = x.shape
    weight = jnp.reshape(weight, (1, D))
    bias = jnp.reshape(bias, (1,)).astype(jnp.float32)  # keep f32 in SMEM (precision)
    itemsize = jnp.dtype(x.dtype).itemsize

    auto_tb, auto_td = _choose_tiles(B, D, itemsize)
    if tile_b is None:
        tile_b = auto_tb
    else:
        tile_b = min(int(tile_b), B)
        if tile_b < B:
            tile_b = max(8, (tile_b // 8) * 8)
    if tile_d is None:
        tile_d = auto_td
    else:
        tile_d = int(tile_d)
        if tile_d < D:
            tile_d = max(128, (tile_d // 128) * 128)
        if tile_d >= D:
            tile_d = D

    grid = (pl.cdiv(B, tile_b), pl.cdiv(D, tile_d))
    kernel = _make_kernel(D, tile_d)

    return pl.pallas_call(
        kernel,
        out_shape=jax.ShapeDtypeStruct((B, 1), x.dtype),
        grid_spec=pltpu.PrefetchScalarGridSpec(
            num_scalar_prefetch=0,
            grid=grid,
            in_specs=[
                # x: tiled along (batch, feature); auto-pipeliner double-buffers the DMA.
                pl.BlockSpec((tile_b, tile_d), lambda i, k: (i, k)),
                # weight: one lane-dense (1, tile_d) slice, reused across all batch tiles.
                pl.BlockSpec((1, tile_d), lambda i, k: (0, k)),
                # bias: whole (1,) f32 array in SMEM, read as a scalar in-kernel.
                pl.BlockSpec(memory_space=pltpu.MemorySpace.SMEM),
            ],
            out_specs=pl.BlockSpec((tile_b, 1), lambda i, k: (i, 0)),
            scratch_shapes=[pltpu.VMEM((tile_b, 1), jnp.float32)],
        ),
        compiler_params=pltpu.CompilerParams(
            # Batch tiles independent -> shard across v7x's 2 TensorCores;
            # feature axis is the reduction (accumulator resident) -> arbitrary, kept last.
            dimension_semantics=("parallel", "arbitrary"),
            vmem_limit_bytes=_vmem_limit_bytes(tile_b, tile_d, itemsize),
        ),
    )(x, weight, bias)


if __name__ == "__main__":
    key = jax.random.PRNGKey(0)
    batch, input_dim = 64, 32

    kx, kw, kb = jax.random.split(key, 3)
    x = jax.random.normal(kx, (batch, input_dim), dtype=jnp.float32)

    # Deterministic parameter init mimicking nn.Linear's uniform(-1/sqrt(D), 1/sqrt(D)).
    bound = 1.0 / (input_dim ** 0.5)
    w = jax.random.uniform(kw, (1, input_dim), jnp.float32, -bound, bound)  # (1, D)
    b = jax.random.uniform(kb, (1,), jnp.float32, -bound, bound)            # (1,)

    # Auto-sized tiles: B=64 -> 4 batch tiles (exercises the pipelined multi-step grid).
    out = jax.block_until_ready(logistic_regression_forward(x, w, b))
    ref = x @ w.T + b
    assert out.shape == (batch, 1)
    assert jnp.allclose(out, ref, atol=1e-5, rtol=1e-5)

    # Also exercise the feature-tiled (reduction-axis) path with a ragged last D tile.
    b2, d2 = 32, 300
    k2x, k2w, k2b = jax.random.split(jax.random.PRNGKey(1), 3)
    x2 = jax.random.normal(k2x, (b2, d2), dtype=jnp.float32)
    w2 = jax.random.normal(k2w, (1, d2), dtype=jnp.float32) * 0.05
    bb2 = jax.random.normal(k2b, (1,), dtype=jnp.float32) * 0.05
    out2 = jax.block_until_ready(
        logistic_regression_forward(x2, w2, bb2, tile_b=8, tile_d=128))
    ref2 = x2 @ w2.T + bb2
    assert out2.shape == (b2, 1)
    assert jnp.allclose(out2, ref2, atol=1e-4, rtol=1e-4)

    print("KERNEL_OK")
</pallas_src>

<mosaic_0001>
module attributes {stable_mosaic.version = 11 : i64} {
  func.func @kernel(%arg0: i32, %arg1: i32, %arg2: memref<16x32xf32, #tpu.memory_space<vmem>>, %arg3: memref<1x32xf32, #tpu.memory_space<vmem>>, %arg4: memref<1xf32, #tpu.memory_space<smem>>, %arg5: memref<16x1xf32, #tpu.memory_space<vmem>>, %arg6: memref<16x1xf32, #tpu.memory_space<vmem>>) attributes {dimension_semantics = [#tpu.dimension_semantics<parallel>, #tpu.dimension_semantics<arbitrary>], iteration_bounds = array<i64: 4, 1>, scalar_prefetch = 0 : i64, scratch_operands = 1 : i64, tpu.core_type = #tpu.core_type<tc>, window_params = [{transform_indices = @transform_0, window_bounds = array<i64: 16, 32>}, {transform_indices = @transform_1, window_bounds = array<i64: 1, 32>}, {transform_indices = @transform_2, window_bounds = array<i64: 1>}, {transform_indices = @transform_3, window_bounds = array<i64: 16, 1>}]} {
    %c0_i32 = arith.constant 0 : i32
    %0 = arith.cmpi eq, %arg1, %c0_i32 : i32
    %1 = arith.extui %0 : i1 to i32
    %c0_i32_0 = arith.constant 0 : i32
    %2 = arith.cmpi ne, %1, %c0_i32_0 : i32
    scf.if %2 {
      %cst_10 = arith.constant 0.000000e+00 : f32
      %15 = vector.broadcast %cst_10 : f32 to vector<16x1xf32>
      %c0_11 = arith.constant 0 : index
      %c0_12 = arith.constant 0 : index
      %16 = vector.load %arg6[%c0_11, %c0_12] : memref<16x1xf32, #tpu.memory_space<vmem>>, vector<16x1xf32>
      tpu.vector_store %arg6[%c0_11, %c0_12], %15 {strides = array<i32>} : memref<16x1xf32, #tpu.memory_space<vmem>>, vector<16x1xf32>,
    } else {
    }
    %c0 = arith.constant 0 : index
    %c0_1 = arith.constant 0 : index
    %3 = vector.load %arg2[%c0, %c0_1] : memref<16x32xf32, #tpu.memory_space<vmem>>, vector<16x32xf32>
    %c0_2 = arith.constant 0 : index
    %c0_3 = arith.constant 0 : index
    %4 = vector.load %arg3[%c0_2, %c0_3] : memref<1x32xf32, #tpu.memory_space<vmem>>, vector<1x32xf32>
    %5 = vector.broadcast %4 : vector<1x32xf32> to vector<16x32xf32>
    %6 = arith.mulf %3, %5 : vector<16x32xf32>
    %c0_4 = arith.constant 0 : index
    %c0_5 = arith.constant 0 : index
    %7 = vector.load %arg6[%c0_4, %c0_5] : memref<16x1xf32, #tpu.memory_space<vmem>>, vector<16x1xf32>
    %cst = arith.constant dense<0.000000e+00> : vector<16xf32>
    %8 = vector.multi_reduction <add>, %6, %cst [1] : vector<16x32xf32> to vector<16xf32>
    %9 = vector.shape_cast %8 : vector<16xf32> to vector<16x1xf32>
    %10 = arith.addf %7, %9 : vector<16x1xf32>
    %c0_6 = arith.constant 0 : index
    %c0_7 = arith.constant 0 : index
    %11 = vector.load %arg6[%c0_6, %c0_7] : memref<16x1xf32, #tpu.memory_space<vmem>>, vector<16x1xf32>
    tpu.vector_store %arg6[%c0_6, %c0_7], %10 {strides = array<i32>} : memref<16x1xf32, #tpu.memory_space<vmem>>, vector<16x1xf32>,
    %c0_i32_8 = arith.constant 0 : i32
    %12 = arith.cmpi eq, %arg1, %c0_i32_8 : i32
    %13 = arith.extui %12 : i1 to i32
    %c0_i32_9 = arith.constant 0 : i32
    %14 = arith.cmpi ne, %13, %c0_i32_9 : i32
    scf.if %14 {
      %c0_10 = arith.constant 0 : index
      %c0_11 = arith.constant 0 : index
      %15 = vector.load %arg6[%c0_10, %c0_11] : memref<16x1xf32, #tpu.memory_space<vmem>>, vector<16x1xf32>
      %c0_12 = arith.constant 0 : index
      %16 = memref.load %arg4[%c0_12] : memref<1xf32, #tpu.memory_space<smem>>
      %17 = vector.broadcast %16 : f32 to vector<16x1xf32>
      %18 = arith.addf %15, %17 : vector<16x1xf32>
      %c0_13 = arith.constant 0 : index
      %c0_14 = arith.constant 0 : index
      %19 = vector.load %arg5[%c0_13, %c0_14] : memref<16x1xf32, #tpu.memory_space<vmem>>, vector<16x1xf32>
      tpu.vector_store %arg5[%c0_13, %c0_14], %18 {strides = array<i32>} : memref<16x1xf32, #tpu.memory_space<vmem>>, vector<16x1xf32>,
    } else {
    }
    return
  }
  func.func @transform_0(%arg0: i32, %arg1: i32) -> (i32, i32) {
    %c0_i32 = arith.constant 0 : i32
    return %arg0, %arg1 : i32, i32
  }
  func.func @transform_1(%arg0: i32, %arg1: i32) -> (i32, i32) {
    %c0_i32 = arith.constant 0 : i32
    %c0_i32_0 = arith.constant 0 : i32
    return %c0_i32, %arg1 : i32, i32
  }
  func.func @transform_2(%arg0: i32, %arg1: i32) -> i32 {
    %c0_i32 = arith.constant 0 : i32
    %c0_i32_0 = arith.constant 0 : i32
    return %c0_i32 : i32
  }
  func.func @transform_3(%arg0: i32, %arg1: i32) -> (i32, i32) {
    %c0_i32 = arith.constant 0 : i32
    %c0_i32_0 = arith.constant 0 : i32
    return %arg0, %c0_i32 : i32, i32
  }
}

</mosaic_0001>

<llo_original>
// kernel: tpu_custom_call.1
$region0: #{tpu_custom_call.1}
  #allocation0 [shape = 'u32[]', space=smem, size = 0x4, offset = 0x4, fixed_abs, tag = 'smem constant byte address 0x4 - core index']
  #allocation1 [shape = 'u32[72,128]{1,0:T(1,128)}', space=vmem, size = 0x9000, scoped, tag = 'internal scratch']
  #allocation2 [shape = 'f32[16,1]{1,0:T(8,128)}', space=vmem, size = 0x2000, scoped, tag = 'scratch operand']
  #allocation3 [shape = 'f32[1]{0:T(128)S(6)}', space=smem, size = 0x200, scoped, tag = 'scoped memory for tpu_custom_call.1']
  %s0 = inlined_call_operand.vmem [shape: f32[64,32], index: 0, kind: input, shape index: {}]
  %s1 = inlined_call_operand.vmem [shape: f32[1,32], index: 1, kind: input, shape index: {}]
  %s2 = inlined_call_operand.<no memory space> [shape: f32[1], index: 2, kind: input, shape index: {}]
  %s3 = inlined_call_operand.vmem [shape: f32[64,1], index: 3, kind: output, shape index: {}]
  %s4 = sld [smem:[#allocation0]]
  $region53: #{tpu_custom_call.1} parent=0
    _
  %s6 = ssub.s32 1, %s4
  %s7 = scalar_select 0, %s6, %s4
  %8 = sst [smem:[#allocation3]] %s2
  loop: start=0, step=1, limit=6
  $region2: #{tpu_custom_call.1} parent=0 // loop_pre_header
    _
  $region3: #{tpu_custom_call.1} parent=0 // loop_header
    %s10 = sphi 0, %s14
    %p11 = scmp.ge.s32.totalorder %s10, 6
    %s17 = sphi 0, %s29
    %s18 = sphi 0, %s25
    %s19 = sphi 0, %s17
    %s20 = sphi 0, %s18
    %s21 = sphi 0, %s19
    %s22 = sphi 0, %s20
    %s34 = sphi 0, %s36
    %s37 = sphi 0, %s34
    %s38 = sphi 0, %s37
    %s54 = sphi 0, %s38
    %s60 = sphi 0, %s62
    %s63 = sphi 0, %s60
    %s64 = sphi 0, %s63
    %s80 = sphi 0, %s64
    %s84 = sphi 0, %s84
    %s86 = sphi 0, %s84
    %s87 = sphi 0, %s86
    %s101 = sphi 0, %s87
    %s107 = sphi 0, %s109
    %s110 = sphi 0, %s107
    %s111 = sphi 0, %s110
    %s127 = sphi 0, %s111
  $region4: #{tpu_custom_call.1} parent=0 // loop_header_branch
    %13 = sbr.rel (%p11) target = $region8
  $region5: #{tpu_custom_call.1} parent=0 // loop_body
    %s15 = ssub.s32 %s10, 1
    %s16 = ssub.s32 %s10, 2
    %s23 = sadd.s32 1, %s18
    %p24 = scmp.ge.s32.totalorder %s23, 1
    %s25 = scalar_select %p24, 0, %s23
    %s26 = sadd.s32 1, %s17
    %s27 = scalar_select %p24, %s26, %s17
    %p28 = scmp.ge.s32.totalorder %s27, 4
    %s29 = scalar_select %p28, 0, %s27
    %s30 = ssub.s32 %s17, %s29
    %s31 = ssub.s32 %s18, %s25
    %s32 = sor.u32 %s30, %s31
    %p33 = scmp.eq.s32.totalorder %s32, 0
    %s35 = sadd.s32 %s34, 1
    %s36 = scalar_select %p33, %s34, %s35
    %p39 = pneg %p33
    %p40 = scmp.eq.s32.totalorder %s10, 3
    %p41 = por %p39, %p40
    %p42 = scmp.ne.s32.totalorder %s34, %s37
    %p43 = scmp.eq.s32.totalorder %s10, 0
    %p44 = por %p42, %p43
    %p45 = scmp.ne.s32.totalorder %s34, %s37
    %p46 = scmp.eq.s32.totalorder %s15, 3
    %p47 = por %p45, %p46
    %p48 = scmp.ne.s32.totalorder %s37, %s38
    %p49 = scmp.eq.s32.totalorder %s15, 0
    %p50 = por %p48, %p49
    %p51 = scmp.ne.s32.totalorder %s37, %s38
    %p52 = scmp.eq.s32.totalorder %s16, 3
    %p53 = por %p51, %p52
    %p55 = scmp.ne.s32.totalorder %s38, %s54
    %p56 = scmp.eq.s32.totalorder %s16, 0
    %p57 = por %p55, %p56
    %s58 = ssub.s32 %s18, %s25
    %p59 = scmp.eq.s32.totalorder %s58, 0
    %s61 = sadd.s32 %s60, 1
    %s62 = scalar_select %p59, %s60, %s61
    %p65 = pneg %p59
    %p66 = scmp.eq.s32.totalorder %s10, 3
    %p67 = por %p65, %p66
    %p68 = scmp.ne.s32.totalorder %s60, %s63
    %p69 = scmp.eq.s32.totalorder %s10, 0
    %p70 = por %p68, %p69
    %p71 = scmp.ne.s32.totalorder %s60, %s63
    %p72 = scmp.eq.s32.totalorder %s15, 3
    %p73 = por %p71, %p72
    %p74 = scmp.ne.s32.totalorder %s63, %s64
    %p75 = scmp.eq.s32.totalorder %s15, 0
    %p76 = por %p74, %p75
    %p77 = scmp.ne.s32.totalorder %s63, %s64
    %p78 = scmp.eq.s32.totalorder %s16, 3
    %p79 = por %p77, %p78
    %p81 = scmp.ne.s32.totalorder %s64, %s80
    %p82 = scmp.eq.s32.totalorder %s16, 0
    %p83 = por %p81, %p82
    %s85 = sadd.s32 %s84, 1
    %p88 = scmp.eq.s32.totalorder %s10, 3
    %p89 = scmp.ne.s32.totalorder %s84, %s86
    %p90 = scmp.eq.s32.totalorder %s10, 0
    %p91 = por %p89, %p90
    %p92 = scmp.ne.s32.totalorder %s84, %s86
    %p93 = scmp.eq.s32.totalorder %s15, 3
    %p94 = por %p92, %p93
    %p95 = scmp.ne.s32.totalorder %s86, %s87
    %p96 = scmp.eq.s32.totalorder %s15, 0
    %p97 = por %p95, %p96
    %p98 = scmp.ne.s32.totalorder %s86, %s87
    %p99 = scmp.eq.s32.totalorder %s16, 3
    %p100 = por %p98, %p99
    %p102 = scmp.ne.s32.totalorder %s87, %s101
    %p103 = scmp.eq.s32.totalorder %s16, 0
    %p104 = por %p102, %p103
    %s105 = ssub.s32 %s17, %s29
    %p106 = scmp.eq.s32.totalorder %s105, 0
    %s108 = sadd.s32 %s107, 1
    %s109 = scalar_select %p106, %s107, %s108
    %p112 = pneg %p106
    %p113 = scmp.eq.s32.totalorder %s10, 3
    %p114 = por %p112, %p113
    %p115 = scmp.ne.s32.totalorder %s107, %s110
    %p116 = scmp.eq.s32.totalorder %s10, 0
    %p117 = por %p115, %p116
    %p118 = scmp.ne.s32.totalorder %s107, %s110
    %p119 = scmp.eq.s32.totalorder %s15, 3
    %p120 = por %p118, %p119
    %p121 = scmp.ne.s32.totalorder %s110, %s111
    %p122 = scmp.eq.s32.totalorder %s15, 0
    %p123 = por %p121, %p122
    %p124 = scmp.ne.s32.totalorder %s110, %s111
    %p125 = scmp.eq.s32.totalorder %s16, 3
    %p126 = por %p124, %p125
    %p128 = scmp.ne.s32.totalorder %s111, %s127
    %p129 = scmp.eq.s32.totalorder %s16, 0
    %p130 = por %p128, %p129
    %p131 = scmp.le.s32.totalorder 1, %s10
    %p132 = scmp.lt.s32.totalorder %s10, 5
    %p133 = pnand %p131, %p132
    %p134 = pneg %p133
    // Predicated region
    $region9: #{tpu_custom_call.1} parent=5 // pred_check
      _
    $region10: #{tpu_custom_call.1} parent=5 // pred_check_branch
      %136 = sbr.rel (%p133) target = $region12
    $region11: #{tpu_custom_call.1} parent=5 // pred_region
      %s137 = ssub.s32 %s10, 1
      // Predicated region
      $region13: #{tpu_custom_call.1} parent=11 // pred_check
        %p138 = pneg %p76
      $region14: #{tpu_custom_call.1} parent=11 // pred_check_branch
        %140 = sbr.rel (%p138) target = $region16
      $region15: #{tpu_custom_call.1} parent=11 // pred_region
        %p141 = scmp.lt.s32.totalorder %s20, 0
        %s142 = scalar_select %p141, %s20, 0
        %s143 = scalar_lea.vmem %s1, %s142
      $region16: #{tpu_custom_call.1} parent=11 // pred_fallthru
        _
      // Predicated region
      $region17: #{tpu_custom_call.1} parent=11 // pred_check
        %p144 = pneg %p97
      $region18: #{tpu_custom_call.1} parent=11 // pred_check_branch
        %146 = sbr.rel (%p144) target = $region20
      $region19: #{tpu_custom_call.1} parent=11 // pred_region
        _
      $region20: #{tpu_custom_call.1} parent=11 // pred_fallthru
        _
    $region12: #{tpu_custom_call.1} parent=5 // pred_fallthru
      _
    %p147 = scmp.lt.s32.totalorder %s10, 4
    // Predicated region
    $region21: #{tpu_custom_call.1} parent=5 // pred_check
      %p148 = pneg %p147
    $region22: #{tpu_custom_call.1} parent=5 // pred_check_branch
      %150 = sbr.rel (%p148) target = $region24
    $region23: #{tpu_custom_call.1} parent=5 // pred_region
      // Predicated region
      $region25: #{tpu_custom_call.1} parent=23 // pred_check
        %p151 = pneg %p44
      $region26: #{tpu_custom_call.1} parent=23 // pred_check_branch
        %153 = sbr.rel (%p151) target = $region28
      $region27: #{tpu_custom_call.1} parent=23 // pred_region
        %s154 = smul.u32 2, %s17
        %p155 = scmp.lt.s32.totalorder %s154, 7
        %s156 = scalar_select %p155, %s154, 7
        %p157 = scmp.lt.s32.totalorder %s18, 0
        %s158 = scalar_select %p157, %s18, 0
        %s159 = sadd.s32 %s158, %s156
        %s160 = smul.addr %s159, 8
        %s161 = scalar_lea.vmem %s0, %s160
        %s162 = smul.u32 2, %s17
      $region28: #{tpu_custom_call.1} parent=23 // pred_fallthru
        _
    $region24: #{tpu_custom_call.1} parent=5 // pred_fallthru
      _
    %p163 = scmp.le.s32.totalorder 1, %s10
    %p164 = scmp.lt.s32.totalorder %s10, 5
    %p165 = pnand %p163, %p164
    %p166 = pneg %p165
    // Predicated region
    $region29: #{tpu_custom_call.1} parent=5 // pred_check
      _
    $region30: #{tpu_custom_call.1} parent=5 // pred_check_branch
      %168 = sbr.rel (%p165) target = $region32
    $region31: #{tpu_custom_call.1} parent=5 // pred_region
      %s169 = ssub.s32 %s10, 1
      %s170 = smul.u32 2, %s19
      %p171 = scmp.lt.s32.totalorder %s170, 7
      %s172 = scalar_select %p171, %s170, 7
      %p173 = scmp.lt.s32.totalorder %s20, 0
      %s174 = scalar_select %p173, %s20, 0
      %s175 = sadd.s32 %s174, %s172
      %s176 = smul.addr %s175, 8
      %s177 = scalar_lea.vmem %s0, %s176
      %p178 = pneg %p50
      %p179 = pneg %p47
      %p180 = scmp.lt.s32.totalorder %s20, 0
      %s181 = scalar_select %p180, %s20, 0
      %s182 = scalar_lea.vmem %s1, %s181
      %p183 = pneg %p76
      %p184 = pneg %p73
      %p185 = pneg %p97
      %p186 = pneg %p94
      %p187 = pneg %p123
      %p188 = pneg %p120
      %s189 = smul.u32 2, %s19
      %p190 = scmp.lt.s32.totalorder %s189, 7
      %s191 = scalar_select %p190, %s189, 7
      %s192 = smul.addr %s191, 8
      %s193 = scalar_lea.vmem %s3, %s192
      %s194 = smul.u32 2, %s19
      %p195 = scmp.lt.s32.totalorder %s194, 7
      %s196 = scalar_select %p195, %s194, 7
      %p197 = scmp.lt.s32.totalorder %s20, 0
      %s198 = scalar_select %p197, %s20, 0
      %s199 = sadd.s32 %s198, %s196
      %s200 = smul.addr %s199, 8
      %s201 = scalar_lea.vmem %s0, %s200
      %s202 = smul.u32 2, %s19
      %p203 = scmp.lt.s32.totalorder %s20, 0
      %s204 = scalar_select %p203, %s20, 0
      %s205 = scalar_lea.vmem %s1, %s204
      %s206 = smul.u32 2, %s19
      %p207 = scmp.lt.s32.totalorder %s206, 7
      %s208 = scalar_select %p207, %s206, 7
      %s209 = smul.addr %s208, 8
      %s210 = scalar_lea.vmem %s3, %s209
      %s211 = smul.u32 2, %s19
      %p212 = scmp.eq.s32.totalorder %s20, 0
      // Predicated region
      $region33: #{tpu_custom_call.1} parent=31 // pred_check
        %p213 = pneg %p212
      $region34: #{tpu_custom_call.1} parent=31 // pred_check_branch
        %215 = sbr.rel (%p213) target = $region36
      $region35: #{tpu_custom_call.1} parent=31 // pred_region
        %vm216 = vcmask 7168
        %217 = vst.msk [vmem:[#allocation2] sm:$0xff] %vm216, 0.0
        %218 = vst.msk [vmem:[#allocation2 + $0x8] sm:$0xff] %vm216, 0.0
      $region36: #{tpu_custom_call.1} parent=31 // pred_fallthru
        _
      %v219 = vld [vmem:[%s201] sm:$0xff]
      %v220 = vld [vmem:[%s201 + $0x8] sm:$0xff]
      %v221 = vld [vmem:[%s205] sm:$0x1]
      %v223 = vperm.slane %v221, 0
      %v225 = vmul.f32 %v219, %v223
      %v226 = vmul.f32 %v220, %v223
      %v227 = vld [vmem:[#allocation2] sm:$0xff]
      %v228 = vld [vmem:[#allocation2 + $0x8] sm:$0xff]
      %vm229 = vcmask 261120
      %v230 = vsel %vm229, %v225, 0.0
      %231 = vadd.xlane.f32.xlu0 %v230
      %v232 = vpop.xlane.xlu0 %231
      %v233 = vsel %vm229, %v226, 0.0
      %234 = vadd.xlane.f32.xlu0 %v233
      %v235 = vpop.xlane.xlu0 %234
      %v236 = vadd.f32 %v227, %v232
      %v237 = vadd.f32 %v228, %v235
      %vm238 = vcmask 7168
      %239 = vst.msk [vmem:[#allocation2] sm:$0xff] %vm238, %v236
      %240 = vst.msk [vmem:[#allocation2 + $0x8] sm:$0xff] %vm238, %v237
      // Predicated region
      $region37: #{tpu_custom_call.1} parent=31 // pred_check
        %p241 = pneg %p212
      $region38: #{tpu_custom_call.1} parent=31 // pred_check_branch
        %243 = sbr.rel (%p241) target = $region40
      $region39: #{tpu_custom_call.1} parent=31 // pred_region
        %v244 = vld [vmem:[#allocation2] sm:$0xff]
        %v245 = vld [vmem:[#allocation2 + $0x8] sm:$0xff]
        %s246 = sld [smem:[#allocation3]]
        %v247 = vstv %s246
        %v248 = vadd.f32 %v244, %v247
        %v249 = vadd.f32 %v245, %v247
        %250 = vst.msk [vmem:[%s210] sm:$0xff] %vm238, %v248
        %251 = vst.msk [vmem:[%s210 + $0x8] sm:$0xff] %vm238, %v249
      $region40: #{tpu_custom_call.1} parent=31 // pred_fallthru
        _
      %s252 = smul.u32 2, %s19
      %p253 = scmp.lt.s32.totalorder %s252, 7
      %s254 = scalar_select %p253, %s252, 7
      %s255 = smul.addr %s254, 8
      %s256 = scalar_lea.vmem %s3, %s255
      // Predicated region
      $region41: #{tpu_custom_call.1} parent=31 // pred_check
        %p257 = pneg %p120
      $region42: #{tpu_custom_call.1} parent=31 // pred_check_branch
        %259 = sbr.rel (%p257) target = $region44
      $region43: #{tpu_custom_call.1} parent=31 // pred_region
        %s260 = smul.u32 2, %s19
      $region44: #{tpu_custom_call.1} parent=31 // pred_fallthru
        _
    $region32: #{tpu_custom_call.1} parent=5 // pred_fallthru
      _
    %p261 = scmp.le.s32.totalorder 2, %s10
    // Predicated region
    $region45: #{tpu_custom_call.1} parent=5 // pred_check
      %p262 = pneg %p261
    $region46: #{tpu_custom_call.1} parent=5 // pred_check_branch
      %264 = sbr.rel (%p262) target = $region48
    $region47: #{tpu_custom_call.1} parent=5 // pred_region
      %s265 = ssub.s32 %s10, 2
      // Predicated region
      $region49: #{tpu_custom_call.1} parent=47 // pred_check
        %p266 = pneg %p126
      $region50: #{tpu_custom_call.1} parent=47 // pred_check_branch
        %268 = sbr.rel (%p266) target = $region52
      $region51: #{tpu_custom_call.1} parent=47 // pred_region
        %s269 = smul.u32 2, %s21
        %p270 = scmp.lt.s32.totalorder %s269, 7
        %s271 = scalar_select %p270, %s269, 7
        %s272 = smul.addr %s271, 8
        %s273 = scalar_lea.vmem %s3, %s272
      $region52: #{tpu_custom_call.1} parent=47 // pred_fallthru
        _
    $region48: #{tpu_custom_call.1} parent=5 // pred_fallthru
      _
  $region6: #{tpu_custom_call.1} parent=0 // loop_footer
    %s14 = sadd.s32 1, %s10
  $region7: #{tpu_custom_call.1} parent=0 // loop_footer_branch
    %9 = sbr.rel target = $region3
  $region8: #{tpu_custom_call.1} parent=0 // loop_exit
    _

</llo_original>
